<compile_context>
chip_gen: v7x
topology: tpu7x:2x2x1
jax: 0.10.0
libtpu: 0.0.40
codegen_flags: <defaults>
</compile_context>

<pallas_src>
import functools

import jax
import jax.numpy as jnp
from jax import lax
from jax.experimental import pallas as pl
from jax.experimental.pallas import tpu as pltpu

LANE = 128            # samples per inner chunk (lane axis of a vreg)
_PAD_SENTINEL = 1e8   # noise value given to padded samples at class index 0


def _hw_params():
    """Generation-aware tile / VMEM / buffering budgets."""
    try:
        vmem = pltpu.get_tpu_info().vmem_capacity_bytes
    except Exception:
        vmem = None
    if vmem is None:
        # Unknown (e.g. interpret mode): conservative, works everywhere.
        return dict(tile_bytes=4 << 20, vmem_limit=32 << 20, noise_buffers=2)
    if vmem <= (80 << 20):
        # v7x-class (64 MiB physical): modest tiles, default double-buffering.
        return dict(tile_bytes=8 << 20, vmem_limit=36 << 20, noise_buffers=2)
    # v5e / v6e (128 MiB physical): large tiles, deeper noise buffering.
    return dict(tile_bytes=16 << 20, vmem_limit=80 << 20, noise_buffers=3)


def _choose_b_tile(B, N, budget_bytes):
    """Largest batch tile whose f32 lane-slab working set fits `budget_bytes`.

    Working set per step is ~3 slabs of (B_tile, N, LANE) f32
    (accumulator carry + perturbation + noise chunk).
    """
    per_b = 3 * N * LANE * 4
    if B * per_b <= budget_bytes or B <= 8:
        return B
    bt = max(8, (budget_bytes // per_b) // 8 * 8)
    bt = min(bt, B)
    while bt > 8 and B % bt:
        bt -= 8
    return bt if (bt > 0 and B % bt == 0) else B


# ---------------------------------------------------------------------------
# Kernel 1: explicit noise streamed from HBM (sample-minor layout) — exact.
# ---------------------------------------------------------------------------
def _fy_noise_kernel(x_ref, y_ref, z_ref, loss_ref, acc_ref, *, sigma,
                     num_samples, n_pad, n_chunks, maximize, unroll):
    si = pl.program_id(1)
    B_t, N, lane = acc_ref.shape

    @pl.when(si == 0)
    def _init():
        acc_ref[...] = jnp.zeros_like(acc_ref)

    x = x_ref[...].astype(jnp.float32)
    if not maximize:
        x = -x                                   # perturbations-lib convention
    xb = jnp.broadcast_to(x[:, :, None], (B_t, N, lane))      # hoisted

    def body(c, acc):
        start = pl.multiple_of(c * lane, lane)
        z = z_ref[:, :, pl.ds(start, lane)].astype(jnp.float32)
        pert = xb + sigma * z
        m = jnp.max(pert, axis=1, keepdims=True)               # one reduce/chunk
        # one_hot = (pert == max); ties are measure-zero with Gaussian noise.
        return acc + jnp.where(pert == m, 1.0, 0.0)

    acc = lax.fori_loop(0, n_chunks, body,
                        jnp.zeros((B_t, N, lane), jnp.float32), unroll=unroll)
    acc_ref[...] += acc                          # single VMEM RMW per grid step

    @pl.when(si == pl.num_programs(1) - 1)
    def _finalize():
        counts = jnp.sum(acc_ref[...], axis=-1)                # (B_t, N)
        if n_pad:
            # Padded samples deterministically landed on class 0 (sentinel
            # noise); subtract their contribution exactly, once.
            cls = lax.broadcasted_iota(jnp.int32, counts.shape, 1)
            counts = counts - jnp.where(cls == 0, jnp.float32(n_pad),
                                        jnp.float32(0.0))
        mean = counts * (1.0 / num_samples)                    # perturbed(x)
        diff = mean - y_ref[...].astype(jnp.float32)
        # maximize=False flips the sign of diff; irrelevant for sum(diff**2).
        loss_ref[...] = jnp.sum(diff * diff, axis=-1, keepdims=True)


def fenchel_young_loss_from_noise(x, y_true, noise, *, sigma=0.01,
                                  maximize=True, tile_bytes=None,
                                  vmem_limit_bytes=None, noise_buffers=None):
    """FY loss forward with user-supplied noise of shape (B, N, S)."""
    B, N = x.shape
    Bn, Nn, S = noise.shape
    assert y_true.shape == (B, N)
    assert (Bn, Nn) == (B, N)

    hw = _hw_params()
    tile_bytes = hw["tile_bytes"] if tile_bytes is None else tile_bytes
    vmem_limit_bytes = (hw["vmem_limit"] if vmem_limit_bytes is None
                        else vmem_limit_bytes)
    noise_buffers = hw["noise_buffers"] if noise_buffers is None else noise_buffers

    B_tile = _choose_b_tile(B, N, vmem_limit_bytes // 3)
    num_b_tiles = B // B_tile

    # Samples per grid step: as many LANE-wide chunks as fit the tile budget.
    bytes_per_lane = B_tile * N * noise.dtype.itemsize
    lanes_per_tile = max(LANE, (tile_bytes // max(1, bytes_per_lane)) // LANE * LANE)
    total_chunks = -(-S // LANE)
    chunks_per_step = max(1, min(total_chunks, lanes_per_tile // LANE))
    n_steps = -(-total_chunks // chunks_per_step)
    sample_tile = chunks_per_step * LANE
    s_pad = n_steps * sample_tile
    n_pad = s_pad - S
    if n_pad:
        # Padded samples get a huge positive perturbation on class 0, making
        # their one-hot contribution deterministic; corrected at finalize.
        pad = jnp.zeros((B, N, n_pad), noise.dtype)
        pad = pad.at[:, 0, :].set(jnp.asarray(_PAD_SENTINEL, noise.dtype))
        noise = jnp.concatenate([noise, pad], axis=-1)

    unroll = max(1, min(8, chunks_per_step))

    kernel = functools.partial(
        _fy_noise_kernel, sigma=float(sigma), num_samples=S, n_pad=int(n_pad),
        n_chunks=chunks_per_step, maximize=maximize, unroll=unroll)

    noise_spec_kwargs = {}
    if noise_buffers and noise_buffers != 2:
        # Deeper buffering (v5e: HBM-bound) — only requested when budgeted.
        noise_spec_kwargs["pipeline_mode"] = pl.Buffered(int(noise_buffers))

    out = pl.pallas_call(
        kernel,
        out_shape=jax.ShapeDtypeStruct((B, 1), jnp.float32),
        grid_spec=pltpu.PrefetchScalarGridSpec(
            num_scalar_prefetch=0,
            grid=(num_b_tiles, n_steps),
            in_specs=[
                pl.BlockSpec((B_tile, N), lambda bi, si: (bi, 0)),      # x
                pl.BlockSpec((B_tile, N), lambda bi, si: (bi, 0)),      # y_true
                pl.BlockSpec((B_tile, N, sample_tile),
                             lambda bi, si: (bi, 0, si),
                             **noise_spec_kwargs),                      # noise
            ],
            out_specs=pl.BlockSpec((B_tile, 1), lambda bi, si: (bi, 0)),
            scratch_shapes=[pltpu.VMEM((B_tile, N, LANE), jnp.float32)],
        ),
        compiler_params=pltpu.CompilerParams(
            dimension_semantics=("parallel", "arbitrary"),
            vmem_limit_bytes=int(vmem_limit_bytes)),
    )(x, y_true, noise)
    return out.reshape(B)


# ---------------------------------------------------------------------------
# Kernel 2: on-chip noise generation (zero HBM noise traffic).
# Requires real TPU hardware (Mosaic PRNG primitives have no CPU lowering).
# ---------------------------------------------------------------------------
def _fy_prng_kernel(seed_ref, x_ref, y_ref, loss_ref, *, sigma, num_samples,
                    n_chunks, maximize, unroll):
    bi = pl.program_id(0)
    pltpu.prng_seed(seed_ref[0] + bi)            # distinct stream per batch tile

    B_t, N = x_ref.shape
    x = x_ref[...].astype(jnp.float32)
    if not maximize:
        x = -x
    xb = jnp.broadcast_to(x[:, :, None], (B_t, N, LANE))       # hoisted

    def one_hot_chunk():
        z = pltpu.stateful_normal((B_t, N, LANE), jnp.float32)
        pert = xb + sigma * z
        m = jnp.max(pert, axis=1, keepdims=True)
        return jnp.where(pert == m, 1.0, 0.0)

    # Main loop: maskless, accumulator carried in registers (no VMEM scratch).
    acc = lax.fori_loop(0, n_chunks - 1, lambda c, a: a + one_hot_chunk(),
                        jnp.zeros((B_t, N, LANE), jnp.float32), unroll=unroll)

    # Tail chunk: the only one that can be partially valid (static count).
    tail_valid = num_samples - (n_chunks - 1) * LANE
    oh = one_hot_chunk()
    if tail_valid < LANE:
        lane_iota = lax.broadcasted_iota(jnp.int32, (B_t, N, LANE), 2)
        oh = jnp.where(lane_iota < tail_valid, oh, 0.0)
    acc = acc + oh

    counts = jnp.sum(acc, axis=-1)                              # one lane reduce
    mean = counts * (1.0 / num_samples)
    diff = mean - y_ref[...].astype(jnp.float32)
    loss_ref[...] = jnp.sum(diff * diff, axis=-1, keepdims=True)


def fenchel_young_loss(x, y_true, *, num_samples=1000, sigma=0.01, seed=0,
                       maximize=True):
    """FY loss forward with on-chip Gaussian noise. Returns loss of shape [B]."""
    B, N = x.shape
    assert y_true.shape == (B, N)

    hw = _hw_params()
    B_tile = _choose_b_tile(B, N, hw["vmem_limit"] // 2)
    num_b_tiles = B // B_tile
    n_chunks = -(-num_samples // LANE)
    unroll = max(1, min(8, n_chunks - 1))
    seed_arr = jnp.asarray([seed], dtype=jnp.int32)

    kernel = functools.partial(_fy_prng_kernel, sigma=float(sigma),
                               num_samples=num_samples, n_chunks=n_chunks,
                               maximize=maximize, unroll=unroll)

    out = pl.pallas_call(
        kernel,
        out_shape=jax.ShapeDtypeStruct((B, 1), jnp.float32),
        grid_spec=pltpu.PrefetchScalarGridSpec(
            num_scalar_prefetch=1,
            grid=(num_b_tiles,),
            in_specs=[
                pl.BlockSpec((B_tile, N), lambda bi, seed: (bi, 0)),   # x
                pl.BlockSpec((B_tile, N), lambda bi, seed: (bi, 0)),   # y_true
            ],
            out_specs=pl.BlockSpec((B_tile, 1), lambda bi, seed: (bi, 0)),
        ),
        compiler_params=pltpu.CompilerParams(
            dimension_semantics=("parallel",),
            vmem_limit_bytes=int(hw["vmem_limit"])),
    )(seed_arr, x, y_true)
    return out.reshape(B)


# ---------------------------------------------------------------------------
# Plain-JAX reference (matches PerturbedFunc.forward for given noise)
# ---------------------------------------------------------------------------
def _reference_fy_loss(x, y_true, noise_bns, sigma, maximize=True):
    xx = x if maximize else -x
    pert = xx[:, :, None] + sigma * noise_bns                  # (B, N, S)
    idx = jnp.argmax(pert, axis=1)                             # (B, S)
    one_hot = jax.nn.one_hot(idx, x.shape[1], axis=1, dtype=jnp.float32)
    mean = jnp.mean(one_hot, axis=-1)                          # (B, N)
    diff = mean - y_true
    if not maximize:
        diff = -diff
    return jnp.sum(diff.reshape(diff.shape[0], -1) ** 2, axis=-1)


if __name__ == "__main__":
    B, N = 2, 32          # batch, number of classes
    S = 1000              # num_samples (module default)
    SIGMA = 0.01          # module default

    key = jax.random.PRNGKey(0)
    k_x, k_y, k_z = jax.random.split(key, 3)

    x = jax.random.normal(k_x, (B, N), dtype=jnp.float32)
    labels = jax.random.randint(k_y, (B,), 0, N)
    y_true = jax.nn.one_hot(labels, N, dtype=jnp.float32)
    # Sample-minor (B, N, S) layout, stored bf16 (halves the only HBM stream);
    # the kernel upcasts to f32 before the perturbation math.
    noise = jax.random.normal(k_z, (B, N, S), dtype=jnp.float32).astype(jnp.bfloat16)

    # 1) Explicit-noise path: exact check against the plain-JAX reference.
    loss_noise = jax.block_until_ready(
        fenchel_young_loss_from_noise(x, y_true, noise, sigma=SIGMA,
                                      maximize=True))
    ref = _reference_fy_loss(x, y_true, noise.astype(jnp.float32), SIGMA,
                             maximize=True)
    assert loss_noise.shape == (B,)
    assert jnp.allclose(loss_noise, ref, atol=1e-5, rtol=1e-5), (loss_noise, ref)

    # 2) On-chip-noise path: needs the hardware Mosaic PRNG; skipped off-TPU
    #    (e.g. CPU / interpret mode, where prng_seed has no lowering).
    if jax.default_backend() == "tpu":
        try:
            loss_prng = jax.block_until_ready(
                fenchel_young_loss(x, y_true, num_samples=S, sigma=SIGMA,
                                   seed=0, maximize=True))
            assert loss_prng.shape == (B,)
            assert bool(jnp.all(jnp.isfinite(loss_prng)))
            assert bool(jnp.all(loss_prng >= 0.0))
            assert bool(jnp.all(loss_prng <= 2.001))
        except NotImplementedError:
            # Forced-interpret environments lack the TPU PRNG primitives.
            pass

    print("KERNEL_OK")
</pallas_src>

<mosaic_0001>
module attributes {stable_mosaic.version = 11 : i64} {
  func.func @_fy_noise_kernel(%arg0: i32, %arg1: i32, %arg2: memref<2x32xf32, #tpu.memory_space<vmem>>, %arg3: memref<2x32xf32, #tpu.memory_space<vmem>>, %arg4: memref<2x32x1024xbf16, #tpu.memory_space<vmem>>, %arg5: memref<2x1xf32, #tpu.memory_space<vmem>>, %arg6: memref<2x32x128xf32, #tpu.memory_space<vmem>>) attributes {dimension_semantics = [#tpu.dimension_semantics<parallel>, #tpu.dimension_semantics<arbitrary>], iteration_bounds = array<i64: 1, 1>, scalar_prefetch = 0 : i64, scratch_operands = 1 : i64, tpu.core_type = #tpu.core_type<tc>, window_params = [{transform_indices = @transform_0, window_bounds = array<i64: 2, 32>}, {transform_indices = @transform_1, window_bounds = array<i64: 2, 32>}, {transform_indices = @transform_2, window_bounds = array<i64: 2, 32, 1024>}, {transform_indices = @transform_3, window_bounds = array<i64: 2, 1>}]} {
    %c0_i32 = arith.constant 0 : i32
    %0 = arith.cmpi eq, %arg1, %c0_i32 : i32
    %1 = arith.extui %0 : i1 to i32
    %c0_i32_0 = arith.constant 0 : i32
    %2 = arith.cmpi ne, %1, %c0_i32_0 : i32
    scf.if %2 {
      %cst_66 = arith.constant 0.000000e+00 : f32
      %142 = vector.broadcast %cst_66 : f32 to vector<2x32x128xf32>
      %c0_67 = arith.constant 0 : index
      %c0_68 = arith.constant 0 : index
      %c0_69 = arith.constant 0 : index
      %143 = vector.load %arg6[%c0_67, %c0_68, %c0_69] : memref<2x32x128xf32, #tpu.memory_space<vmem>>, vector<2x32x128xf32>
      tpu.vector_store %arg6[%c0_67, %c0_68, %c0_69], %142 {strides = array<i32>} : memref<2x32x128xf32, #tpu.memory_space<vmem>>, vector<2x32x128xf32>,
    } else {
    }
    %c0 = arith.constant 0 : index
    %c0_1 = arith.constant 0 : index
    %3 = vector.load %arg2[%c0, %c0_1] : memref<2x32xf32, #tpu.memory_space<vmem>>, vector<2x32xf32>
    %4 = vector.shape_cast %3 : vector<2x32xf32> to vector<2x32x1xf32>
    %5 = vector.shape_cast %4 : vector<2x32x1xf32> to vector<2x32x1xf32>
    %6 = vector.broadcast %5 : vector<2x32x1xf32> to vector<2x32x128xf32>
    %cst = arith.constant 0.000000e+00 : f32
    %7 = vector.broadcast %cst : f32 to vector<2x32x128xf32>
    %c0_i32_2 = arith.constant 0 : i32
    %c128_i32 = arith.constant 128 : i32
    %8 = arith.muli %c0_i32_2, %c128_i32 : i32
    %9 = tpu.assume_multiple %8, 128 : i32
    %c0_3 = arith.constant 0 : index
    %c0_4 = arith.constant 0 : index
    %10 = arith.index_cast %9 : i32 to index
    %11 = vector.load %arg4[%c0_3, %c0_4, %10] : memref<2x32x1024xbf16, #tpu.memory_space<vmem>>, vector<2x32x128xbf16>
    %12 = arith.extf %11 : vector<2x32x128xbf16> to vector<2x32x128xf32>
    %cst_5 = arith.constant 0.00999999977 : f32
    %13 = vector.broadcast %cst_5 : f32 to vector<2x32x128xf32>
    %14 = arith.mulf %13, %12 : vector<2x32x128xf32>
    %15 = arith.addf %6, %14 : vector<2x32x128xf32>
    %cst_6 = arith.constant dense<0xFF800000> : vector<2x128xf32>
    %16 = vector.multi_reduction <maximumf>, %15, %cst_6 [1] : vector<2x32x128xf32> to vector<2x128xf32>
    %17 = vector.shape_cast %16 : vector<2x128xf32> to vector<2x1x128xf32>
    %18 = vector.broadcast %17 : vector<2x1x128xf32> to vector<2x32x128xf32>
    %19 = arith.cmpf oeq, %15, %18 : vector<2x32x128xf32>
    %cst_7 = arith.constant 1.000000e+00 : f32
    %cst_8 = arith.constant 0.000000e+00 : f32
    %20 = vector.broadcast %cst_7 : f32 to vector<2x32x128xf32>
    %21 = vector.broadcast %cst_8 : f32 to vector<2x32x128xf32>
    %22 = arith.select %19, %20, %21 : vector<2x32x128xi1>, vector<2x32x128xf32>
    %23 = arith.addf %7, %22 : vector<2x32x128xf32>
    %c1_i32 = arith.constant 1 : i32
    %c128_i32_9 = arith.constant 128 : i32
    %24 = arith.muli %c1_i32, %c128_i32_9 : i32
    %25 = tpu.assume_multiple %24, 128 : i32
    %c0_10 = arith.constant 0 : index
    %c0_11 = arith.constant 0 : index
    %26 = arith.index_cast %25 : i32 to index
    %27 = vector.load %arg4[%c0_10, %c0_11, %26] : memref<2x32x1024xbf16, #tpu.memory_space<vmem>>, vector<2x32x128xbf16>
    %28 = arith.extf %27 : vector<2x32x128xbf16> to vector<2x32x128xf32>
    %cst_12 = arith.constant 0.00999999977 : f32
    %29 = vector.broadcast %cst_12 : f32 to vector<2x32x128xf32>
    %30 = arith.mulf %29, %28 : vector<2x32x128xf32>
    %31 = arith.addf %6, %30 : vector<2x32x128xf32>
    %cst_13 = arith.constant dense<0xFF800000> : vector<2x128xf32>
    %32 = vector.multi_reduction <maximumf>, %31, %cst_13 [1] : vector<2x32x128xf32> to vector<2x128xf32>
    %33 = vector.shape_cast %32 : vector<2x128xf32> to vector<2x1x128xf32>
    %34 = vector.broadcast %33 : vector<2x1x128xf32> to vector<2x32x128xf32>
    %35 = arith.cmpf oeq, %31, %34 : vector<2x32x128xf32>
    %cst_14 = arith.constant 1.000000e+00 : f32
    %cst_15 = arith.constant 0.000000e+00 : f32
    %36 = vector.broadcast %cst_14 : f32 to vector<2x32x128xf32>
    %37 = vector.broadcast %cst_15 : f32 to vector<2x32x128xf32>
    %38 = arith.select %35, %36, %37 : vector<2x32x128xi1>, vector<2x32x128xf32>
    %39 = arith.addf %23, %38 : vector<2x32x128xf32>
    %c2_i32 = arith.constant 2 : i32
    %c128_i32_16 = arith.constant 128 : i32
    %40 = arith.muli %c2_i32, %c128_i32_16 : i32
    %41 = tpu.assume_multiple %40, 128 : i32
    %c0_17 = arith.constant 0 : index
    %c0_18 = arith.constant 0 : index
    %42 = arith.index_cast %41 : i32 to index
    %43 = vector.load %arg4[%c0_17, %c0_18, %42] : memref<2x32x1024xbf16, #tpu.memory_space<vmem>>, vector<2x32x128xbf16>
    %44 = arith.extf %43 : vector<2x32x128xbf16> to vector<2x32x128xf32>
    %cst_19 = arith.constant 0.00999999977 : f32
    %45 = vector.broadcast %cst_19 : f32 to vector<2x32x128xf32>
    %46 = arith.mulf %45, %44 : vector<2x32x128xf32>
    %47 = arith.addf %6, %46 : vector<2x32x128xf32>
    %cst_20 = arith.constant dense<0xFF800000> : vector<2x128xf32>
    %48 = vector.multi_reduction <maximumf>, %47, %cst_20 [1] : vector<2x32x128xf32> to vector<2x128xf32>
    %49 = vector.shape_cast %48 : vector<2x128xf32> to vector<2x1x128xf32>
    %50 = vector.broadcast %49 : vector<2x1x128xf32> to vector<2x32x128xf32>
    %51 = arith.cmpf oeq, %47, %50 : vector<2x32x128xf32>
    %cst_21 = arith.constant 1.000000e+00 : f32
    %cst_22 = arith.constant 0.000000e+00 : f32
    %52 = vector.broadcast %cst_21 : f32 to vector<2x32x128xf32>
    %53 = vector.broadcast %cst_22 : f32 to vector<2x32x128xf32>
    %54 = arith.select %51, %52, %53 : vector<2x32x128xi1>, vector<2x32x128xf32>
    %55 = arith.addf %39, %54 : vector<2x32x128xf32>
    %c3_i32 = arith.constant 3 : i32
    %c128_i32_23 = arith.constant 128 : i32
    %56 = arith.muli %c3_i32, %c128_i32_23 : i32
    %57 = tpu.assume_multiple %56, 128 : i32
    %c0_24 = arith.constant 0 : index
    %c0_25 = arith.constant 0 : index
    %58 = arith.index_cast %57 : i32 to index
    %59 = vector.load %arg4[%c0_24, %c0_25, %58] : memref<2x32x1024xbf16, #tpu.memory_space<vmem>>, vector<2x32x128xbf16>
    %60 = arith.extf %59 : vector<2x32x128xbf16> to vector<2x32x128xf32>
    %cst_26 = arith.constant 0.00999999977 : f32
    %61 = vector.broadcast %cst_26 : f32 to vector<2x32x128xf32>
    %62 = arith.mulf %61, %60 : vector<2x32x128xf32>
    %63 = arith.addf %6, %62 : vector<2x32x128xf32>
    %cst_27 = arith.constant dense<0xFF800000> : vector<2x128xf32>
    %64 = vector.multi_reduction <maximumf>, %63, %cst_27 [1] : vector<2x32x128xf32> to vector<2x128xf32>
    %65 = vector.shape_cast %64 : vector<2x128xf32> to vector<2x1x128xf32>
    %66 = vector.broadcast %65 : vector<2x1x128xf32> to vector<2x32x128xf32>
    %67 = arith.cmpf oeq, %63, %66 : vector<2x32x128xf32>
    %cst_28 = arith.constant 1.000000e+00 : f32
    %cst_29 = arith.constant 0.000000e+00 : f32
    %68 = vector.broadcast %cst_28 : f32 to vector<2x32x128xf32>
    %69 = vector.broadcast %cst_29 : f32 to vector<2x32x128xf32>
    %70 = arith.select %67, %68, %69 : vector<2x32x128xi1>, vector<2x32x128xf32>
    %71 = arith.addf %55, %70 : vector<2x32x128xf32>
    %c4_i32 = arith.constant 4 : i32
    %c128_i32_30 = arith.constant 128 : i32
    %72 = arith.muli %c4_i32, %c128_i32_30 : i32
    %73 = tpu.assume_multiple %72, 128 : i32
    %c0_31 = arith.constant 0 : index
    %c0_32 = arith.constant 0 : index
    %74 = arith.index_cast %73 : i32 to index
    %75 = vector.load %arg4[%c0_31, %c0_32, %74] : memref<2x32x1024xbf16, #tpu.memory_space<vmem>>, vector<2x32x128xbf16>
    %76 = arith.extf %75 : vector<2x32x128xbf16> to vector<2x32x128xf32>
    %cst_33 = arith.constant 0.00999999977 : f32
    %77 = vector.broadcast %cst_33 : f32 to vector<2x32x128xf32>
    %78 = arith.mulf %77, %76 : vector<2x32x128xf32>
    %79 = arith.addf %6, %78 : vector<2x32x128xf32>
    %cst_34 = arith.constant dense<0xFF800000> : vector<2x128xf32>
    %80 = vector.multi_reduction <maximumf>, %79, %cst_34 [1] : vector<2x32x128xf32> to vector<2x128xf32>
    %81 = vector.shape_cast %80 : vector<2x128xf32> to vector<2x1x128xf32>
    %82 = vector.broadcast %81 : vector<2x1x128xf32> to vector<2x32x128xf32>
    %83 = arith.cmpf oeq, %79, %82 : vector<2x32x128xf32>
    %cst_35 = arith.constant 1.000000e+00 : f32
    %cst_36 = arith.constant 0.000000e+00 : f32
    %84 = vector.broadcast %cst_35 : f32 to vector<2x32x128xf32>
    %85 = vector.broadcast %cst_36 : f32 to vector<2x32x128xf32>
    %86 = arith.select %83, %84, %85 : vector<2x32x128xi1>, vector<2x32x128xf32>
    %87 = arith.addf %71, %86 : vector<2x32x128xf32>
    %c5_i32 = arith.constant 5 : i32
    %c128_i32_37 = arith.constant 128 : i32
    %88 = arith.muli %c5_i32, %c128_i32_37 : i32
    %89 = tpu.assume_multiple %88, 128 : i32
    %c0_38 = arith.constant 0 : index
    %c0_39 = arith.constant 0 : index
    %90 = arith.index_cast %89 : i32 to index
    %91 = vector.load %arg4[%c0_38, %c0_39, %90] : memref<2x32x1024xbf16, #tpu.memory_space<vmem>>, vector<2x32x128xbf16>
    %92 = arith.extf %91 : vector<2x32x128xbf16> to vector<2x32x128xf32>
    %cst_40 = arith.constant 0.00999999977 : f32
    %93 = vector.broadcast %cst_40 : f32 to vector<2x32x128xf32>
    %94 = arith.mulf %93, %92 : vector<2x32x128xf32>
    %95 = arith.addf %6, %94 : vector<2x32x128xf32>
    %cst_41 = arith.constant dense<0xFF800000> : vector<2x128xf32>
    %96 = vector.multi_reduction <maximumf>, %95, %cst_41 [1] : vector<2x32x128xf32> to vector<2x128xf32>
    %97 = vector.shape_cast %96 : vector<2x128xf32> to vector<2x1x128xf32>
    %98 = vector.broadcast %97 : vector<2x1x128xf32> to vector<2x32x128xf32>
    %99 = arith.cmpf oeq, %95, %98 : vector<2x32x128xf32>
    %cst_42 = arith.constant 1.000000e+00 : f32
    %cst_43 = arith.constant 0.000000e+00 : f32
    %100 = vector.broadcast %cst_42 : f32 to vector<2x32x128xf32>
    %101 = vector.broadcast %cst_43 : f32 to vector<2x32x128xf32>
    %102 = arith.select %99, %100, %101 : vector<2x32x128xi1>, vector<2x32x128xf32>
    %103 = arith.addf %87, %102 : vector<2x32x128xf32>
    %c6_i32 = arith.constant 6 : i32
    %c128_i32_44 = arith.constant 128 : i32
    %104 = arith.muli %c6_i32, %c128_i32_44 : i32
    %105 = tpu.assume_multiple %104, 128 : i32
    %c0_45 = arith.constant 0 : index
    %c0_46 = arith.constant 0 : index
    %106 = arith.index_cast %105 : i32 to index
    %107 = vector.load %arg4[%c0_45, %c0_46, %106] : memref<2x32x1024xbf16, #tpu.memory_space<vmem>>, vector<2x32x128xbf16>
    %108 = arith.extf %107 : vector<2x32x128xbf16> to vector<2x32x128xf32>
    %cst_47 = arith.constant 0.00999999977 : f32
    %109 = vector.broadcast %cst_47 : f32 to vector<2x32x128xf32>
    %110 = arith.mulf %109, %108 : vector<2x32x128xf32>
    %111 = arith.addf %6, %110 : vector<2x32x128xf32>
    %cst_48 = arith.constant dense<0xFF800000> : vector<2x128xf32>
    %112 = vector.multi_reduction <maximumf>, %111, %cst_48 [1] : vector<2x32x128xf32> to vector<2x128xf32>
    %113 = vector.shape_cast %112 : vector<2x128xf32> to vector<2x1x128xf32>
    %114 = vector.broadcast %113 : vector<2x1x128xf32> to vector<2x32x128xf32>
    %115 = arith.cmpf oeq, %111, %114 : vector<2x32x128xf32>
    %cst_49 = arith.constant 1.000000e+00 : f32
    %cst_50 = arith.constant 0.000000e+00 : f32
    %116 = vector.broadcast %cst_49 : f32 to vector<2x32x128xf32>
    %117 = vector.broadcast %cst_50 : f32 to vector<2x32x128xf32>
    %118 = arith.select %115, %116, %117 : vector<2x32x128xi1>, vector<2x32x128xf32>
    %119 = arith.addf %103, %118 : vector<2x32x128xf32>
    %c7_i32 = arith.constant 7 : i32
    %c128_i32_51 = arith.constant 128 : i32
    %120 = arith.muli %c7_i32, %c128_i32_51 : i32
    %121 = tpu.assume_multiple %120, 128 : i32
    %c0_52 = arith.constant 0 : index
    %c0_53 = arith.constant 0 : index
    %122 = arith.index_cast %121 : i32 to index
    %123 = vector.load %arg4[%c0_52, %c0_53, %122] : memref<2x32x1024xbf16, #tpu.memory_space<vmem>>, vector<2x32x128xbf16>
    %124 = arith.extf %123 : vector<2x32x128xbf16> to vector<2x32x128xf32>
    %cst_54 = arith.constant 0.00999999977 : f32
    %125 = vector.broadcast %cst_54 : f32 to vector<2x32x128xf32>
    %126 = arith.mulf %125, %124 : vector<2x32x128xf32>
    %127 = arith.addf %6, %126 : vector<2x32x128xf32>
    %cst_55 = arith.constant dense<0xFF800000> : vector<2x128xf32>
    %128 = vector.multi_reduction <maximumf>, %127, %cst_55 [1] : vector<2x32x128xf32> to vector<2x128xf32>
    %129 = vector.shape_cast %128 : vector<2x128xf32> to vector<2x1x128xf32>
    %130 = vector.broadcast %129 : vector<2x1x128xf32> to vector<2x32x128xf32>
    %131 = arith.cmpf oeq, %127, %130 : vector<2x32x128xf32>
    %cst_56 = arith.constant 1.000000e+00 : f32
    %cst_57 = arith.constant 0.000000e+00 : f32
    %132 = vector.broadcast %cst_56 : f32 to vector<2x32x128xf32>
    %133 = vector.broadcast %cst_57 : f32 to vector<2x32x128xf32>
    %134 = arith.select %131, %132, %133 : vector<2x32x128xi1>, vector<2x32x128xf32>
    %135 = arith.addf %119, %134 : vector<2x32x128xf32>
    %c8_i32 = arith.constant 8 : i32
    %c0_58 = arith.constant 0 : index
    %c0_59 = arith.constant 0 : index
    %c0_60 = arith.constant 0 : index
    %136 = vector.load %arg6[%c0_58, %c0_59, %c0_60] : memref<2x32x128xf32, #tpu.memory_space<vmem>>, vector<2x32x128xf32>
    %137 = arith.addf %136, %135 : vector<2x32x128xf32>
    %c0_61 = arith.constant 0 : index
    %c0_62 = arith.constant 0 : index
    %c0_63 = arith.constant 0 : index
    %138 = vector.load %arg6[%c0_61, %c0_62, %c0_63] : memref<2x32x128xf32, #tpu.memory_space<vmem>>, vector<2x32x128xf32>
    tpu.vector_store %arg6[%c0_61, %c0_62, %c0_63], %137 {strides = array<i32>} : memref<2x32x128xf32, #tpu.memory_space<vmem>>, vector<2x32x128xf32>,
    %c0_i32_64 = arith.constant 0 : i32
    %139 = arith.cmpi eq, %arg1, %c0_i32_64 : i32
    %140 = arith.extui %139 : i1 to i32
    %c0_i32_65 = arith.constant 0 : i32
    %141 = arith.cmpi ne, %140, %c0_i32_65 : i32
    scf.if %141 {
      %c0_66 = arith.constant 0 : index
      %c0_67 = arith.constant 0 : index
      %c0_68 = arith.constant 0 : index
      %142 = vector.load %arg6[%c0_66, %c0_67, %c0_68] : memref<2x32x128xf32, #tpu.memory_space<vmem>>, vector<2x32x128xf32>
      %cst_69 = arith.constant dense<0.000000e+00> : vector<2x32xf32>
      %143 = vector.multi_reduction <add>, %142, %cst_69 [2] : vector<2x32x128xf32> to vector<2x32xf32>
      %144 = tpu.iota {dimensions = array<i32: 1>} : vector<2x32xi32>
      %c0_i32_70 = arith.constant 0 : i32
      %145 = vector.broadcast %c0_i32_70 : i32 to vector<2x32xi32>
      %146 = arith.cmpi eq, %144, %145 : vector<2x32xi32>
      %cst_71 = arith.constant 2.400000e+01 : f32
      %cst_72 = arith.constant 0.000000e+00 : f32
      %147 = vector.broadcast %cst_71 : f32 to vector<2x32xf32>
      %148 = vector.broadcast %cst_72 : f32 to vector<2x32xf32>
      %149 = arith.select %146, %147, %148 : vector<2x32xi1>, vector<2x32xf32>
      %150 = arith.subf %143, %149 : vector<2x32xf32>
      %cst_73 = arith.constant 1.000000e-03 : f32
      %151 = vector.broadcast %cst_73 : f32 to vector<2x32xf32>
      %152 = arith.mulf %150, %151 : vector<2x32xf32>
      %c0_74 = arith.constant 0 : index
      %c0_75 = arith.constant 0 : index
      %153 = vector.load %arg3[%c0_74, %c0_75] : memref<2x32xf32, #tpu.memory_space<vmem>>, vector<2x32xf32>
      %154 = arith.subf %152, %153 : vector<2x32xf32>
      %155 = arith.mulf %154, %154 : vector<2x32xf32>
      %cst_76 = arith.constant dense<0.000000e+00> : vector<2xf32>
      %156 = vector.multi_reduction <add>, %155, %cst_76 [1] : vector<2x32xf32> to vector<2xf32>
      %157 = vector.shape_cast %156 : vector<2xf32> to vector<2x1xf32>
      %c0_77 = arith.constant 0 : index
      %c0_78 = arith.constant 0 : index
      %158 = vector.load %arg5[%c0_77, %c0_78] : memref<2x1xf32, #tpu.memory_space<vmem>>, vector<2x1xf32>
      tpu.vector_store %arg5[%c0_77, %c0_78], %157 {strides = array<i32>} : memref<2x1xf32, #tpu.memory_space<vmem>>, vector<2x1xf32>,
    } else {
    }
    return
  }
  func.func @transform_0(%arg0: i32, %arg1: i32) -> (i32, i32) {
    %c0_i32 = arith.constant 0 : i32
    %c0_i32_0 = arith.constant 0 : i32
    return %arg0, %c0_i32 : i32, i32
  }
  func.func @transform_1(%arg0: i32, %arg1: i32) -> (i32, i32) {
    %c0_i32 = arith.constant 0 : i32
    %c0_i32_0 = arith.constant 0 : i32
    return %arg0, %c0_i32 : i32, i32
  }
  func.func @transform_2(%arg0: i32, %arg1: i32) -> (i32, i32, i32) {
    %c0_i32 = arith.constant 0 : i32
    %c0_i32_0 = arith.constant 0 : i32
    return %arg0, %c0_i32, %arg1 : i32, i32, i32
  }
  func.func @transform_3(%arg0: i32, %arg1: i32) -> (i32, i32) {
    %c0_i32 = arith.constant 0 : i32
    %c0_i32_0 = arith.constant 0 : i32
    return %arg0, %c0_i32 : i32, i32
  }
}

</mosaic_0001>

<llo_original>
// kernel: tpu_custom_call.1
$region0: #{tpu_custom_call.1}
  #allocation0 [shape = 'u32[]', space=smem, size = 0x4, offset = 0x4, fixed_abs, tag = 'smem constant byte address 0x4 - core index']
  #allocation1 [shape = 'u32[144,128]{1,0:T(1,128)}', space=vmem, size = 0x12000, scoped, tag = 'internal scratch']
  #allocation2 [shape = 'f32[2,32,128]{2,1,0:T(8,128)}', space=vmem, size = 0x8000, scoped, tag = 'scratch operand']
  %s0 = inlined_call_operand.hbm [shape: f32[2,32], index: 0, kind: input, shape index: {}]
  %s1 = inlined_call_operand.vmem [shape: f32[2,32], index: 1, kind: input, shape index: {}]
  %s2 = inlined_call_operand.hbm [shape: bf16[2,32,1024], index: 2, kind: input, shape index: {}]
  %s3 = inlined_call_operand.vmem [shape: f32[2,1], index: 3, kind: output, shape index: {}]
  %s4 = sld [smem:[#allocation0]]
  $region38: #{tpu_custom_call.1} parent=0
    _
  %s6 = ssub.s32 1, %s4
  %s7 = scalar_select 0, %s6, %s4
  $region1: #{tpu_custom_call.1} parent=0
    #allocation3 [shape = 'u8[1024]{0}', space=vmem, size = 0x400, scoped, tag = 'input window, operand 0, single buffered']
    #allocation4 [shape = 's32[1]{0}', space=sflag, size = 0x4, scoped, tag = 'scoped memory for tpu_custom_call.1']
    #allocation5 [shape = 'u8[131072]{0}', space=vmem, size = 0x20000, scoped, tag = 'input window, operand 2, single buffered']
    #allocation6 [shape = 's32[1]{0}', space=sflag, size = 0x4, scoped, tag = 'scoped memory for tpu_custom_call.1']
    %8 = vsyncpa [#allocation4], 0
    %9 = vsyncpa [#allocation6], 0
    // Predicated region
    $region2: #{tpu_custom_call.1} parent=1 // pred_check
      _
    $region3: #{tpu_custom_call.1} parent=1 // pred_check_branch
      %11 = sbr.rel (0) target = $region5
    $region4: #{tpu_custom_call.1} parent=1 // pred_region
      %s13 = ssub.s32 32, 32
      %14 = vsyncadd [#allocation4], %s13
      %s16 = sshll.u32 [#allocation3], 4
      %s17 = int_to_ptr.vmem [resolvable:$true] %s16
      %19 = dma.hbm_to_vmem [thread:$0]  %s0, 32, %s17, [#allocation4]
    $region5: #{tpu_custom_call.1} parent=1 // pred_fallthru
      _
    // Predicated region
    $region6: #{tpu_custom_call.1} parent=1 // pred_check
      _
    $region7: #{tpu_custom_call.1} parent=1 // pred_check_branch
      %21 = sbr.rel (0) target = $region9
    $region8: #{tpu_custom_call.1} parent=1 // pred_region
      _
    $region9: #{tpu_custom_call.1} parent=1 // pred_fallthru
      _
    // Predicated region
    $region10: #{tpu_custom_call.1} parent=1 // pred_check
      _
    $region11: #{tpu_custom_call.1} parent=1 // pred_check_branch
      %23 = sbr.rel (0) target = $region13
    $region12: #{tpu_custom_call.1} parent=1 // pred_region
      %s25 = ssub.s32 4096, 4096
      %26 = vsyncadd [#allocation6], %s25
      %s27 = sshll.u32 [#allocation5], 4
      %s28 = int_to_ptr.vmem [resolvable:$true] %s27
      %33 = dma.hbm_to_vmem [thread:$0]  %s2, 4096, %s28, [#allocation6], 512, 512, 32
    $region13: #{tpu_custom_call.1} parent=1 // pred_fallthru
      _
    // Predicated region
    $region14: #{tpu_custom_call.1} parent=1 // pred_check
      _
    $region15: #{tpu_custom_call.1} parent=1 // pred_check_branch
      %35 = sbr.rel (0) target = $region17
    $region16: #{tpu_custom_call.1} parent=1 // pred_region
      %36 = dma.done [#allocation4], 32
    $region17: #{tpu_custom_call.1} parent=1 // pred_fallthru
      _
    // Predicated region
    $region18: #{tpu_custom_call.1} parent=1 // pred_check
      _
    $region19: #{tpu_custom_call.1} parent=1 // pred_check_branch
      %38 = sbr.rel (0) target = $region21
    $region20: #{tpu_custom_call.1} parent=1 // pred_region
      %39 = dma.done [#allocation6], 4096
    $region21: #{tpu_custom_call.1} parent=1 // pred_fallthru
      _
    %p40 = scmp.eq.s32.totalorder 0, 0
    // Predicated region
    $region22: #{tpu_custom_call.1} parent=1 // pred_check
      %p41 = pneg %p40
    $region23: #{tpu_custom_call.1} parent=1 // pred_check_branch
      %43 = sbr.rel (%p41) target = $region25
    $region24: #{tpu_custom_call.1} parent=1 // pred_region
      %44 = vst [vmem:[#allocation2] sm:$0xff] 0.0
      %45 = vst [vmem:[#allocation2 + $0x8] sm:$0xff] 0.0
      %46 = vst [vmem:[#allocation2 + $0x10] sm:$0xff] 0.0
      %47 = vst [vmem:[#allocation2 + $0x18] sm:$0xff] 0.0
      %48 = vst [vmem:[#allocation2 + $0x20] sm:$0xff] 0.0
      %49 = vst [vmem:[#allocation2 + $0x28] sm:$0xff] 0.0
      %50 = vst [vmem:[#allocation2 + $0x30] sm:$0xff] 0.0
      %51 = vst [vmem:[#allocation2 + $0x38] sm:$0xff] 0.0
    $region25: #{tpu_custom_call.1} parent=1 // pred_fallthru
      _
    %v52 = vld [vmem:[#allocation3] sm:$0x3]
    %v53 = vlaneseq
    %v54 = vshrl.u32 %v53, 7
    %v55 = vsub.s32 0, %v54
    %v56 = vrot.slane %v52, %v55
    %58 = vbcast.lane.b32.xlu0 %v56, 256
    %v59 = vpop.permute.xlu0 %58
    %s61 = sor.u32 256, 8
    %62 = vbcast.lane.b32.xlu0 %v56, %s61
    %v63 = vpop.permute.xlu0 %62
    %s65 = sor.u32 256, 16
    %66 = vbcast.lane.b32.xlu0 %v56, %s65
    %v67 = vpop.permute.xlu0 %66
    %s69 = sor.u32 256, 24
    %70 = vbcast.lane.b32.xlu0 %v56, %s69
    %v71 = vpop.permute.xlu0 %70
    %v72 = vlaneseq
    %v73 = vshrl.u32 %v72, 7
    %v74 = vsub.s32 1, %v73
    %v75 = vrot.slane %v52, %v74
    %77 = vbcast.lane.b32.xlu0 %v75, 256
    %v78 = vpop.permute.xlu0 %77
    %s80 = sor.u32 256, 8
    %81 = vbcast.lane.b32.xlu0 %v75, %s80
    %v82 = vpop.permute.xlu0 %81
    %s84 = sor.u32 256, 16
    %85 = vbcast.lane.b32.xlu0 %v75, %s84
    %v86 = vpop.permute.xlu0 %85
    %s88 = sor.u32 256, 24
    %89 = vbcast.lane.b32.xlu0 %v75, %s88
    %v90 = vpop.permute.xlu0 %89
    %v91 = vld [vmem:[#allocation5] sm:$0xf]
    %v92 = vld [vmem:[#allocation5 + $0x20] sm:$0xf]
    %v93 = vld [vmem:[#allocation5 + $0x40] sm:$0xf]
    %v94 = vld [vmem:[#allocation5 + $0x60] sm:$0xf]
    %v95 = vld [vmem:[#allocation5 + $0x80] sm:$0xf]
    %v96 = vld [vmem:[#allocation5 + $0xa0] sm:$0xf]
    %v97 = vld [vmem:[#allocation5 + $0xc0] sm:$0xf]
    %v98 = vld [vmem:[#allocation5 + $0xe0] sm:$0xf]
    %v99 = vunpack.c.l.bf16 %v91
    %v100 = vunpack.c.l.bf16 %v92
    %v101 = vunpack.c.l.bf16 %v93
    %v102 = vunpack.c.l.bf16 %v94
    %v103 = vunpack.c.l.bf16 %v95
    %v104 = vunpack.c.l.bf16 %v96
    %v105 = vunpack.c.l.bf16 %v97
    %v106 = vunpack.c.l.bf16 %v98
    %v107 = vmul.f32 %v99, 0.01
    %v108 = vmul.f32 %v100, 0.01
    %v109 = vmul.f32 %v101, 0.01
    %v110 = vmul.f32 %v102, 0.01
    %v111 = vmul.f32 %v103, 0.01
    %v112 = vmul.f32 %v104, 0.01
    %v113 = vmul.f32 %v105, 0.01
    %v114 = vmul.f32 %v106, 0.01
    %v115 = vadd.f32 %v59, %v107
    %v116 = vadd.f32 %v63, %v108
    %v117 = vadd.f32 %v67, %v109
    %v118 = vadd.f32 %v71, %v110
    %v119 = vadd.f32 %v78, %v111
    %v120 = vadd.f32 %v82, %v112
    %v121 = vadd.f32 %v86, %v113
    %v122 = vadd.f32 %v90, %v114
    %v123 = vmax.f32 %v115, %v117
    %v124 = vmax.f32 %v116, %v118
    %v125 = vmax.f32 %v123, %v124
    %v126 = vrot.slane %v125, 4
    %v127 = vmax.f32 %v125, %v126
    %v128 = vrot.slane %v127, 2
    %v129 = vmax.f32 %v127, %v128
    %v130 = vrot.slane %v129, 1
    %v131 = vmax.f32 %v129, %v130
    %v132 = vmax.f32 %v119, %v121
    %v133 = vmax.f32 %v120, %v122
    %v134 = vmax.f32 %v132, %v133
    %v135 = vrot.slane %v134, 4
    %v136 = vmax.f32 %v134, %v135
    %v137 = vrot.slane %v136, 2
    %v138 = vmax.f32 %v136, %v137
    %v139 = vrot.slane %v138, 1
    %v140 = vmax.f32 %v138, %v139
    %vm141 = vcmp.eq.f32.partialorder %v115, %v131
    %vm142 = vcmp.eq.f32.partialorder %v116, %v131
    %vm143 = vcmp.eq.f32.partialorder %v117, %v131
    %vm144 = vcmp.eq.f32.partialorder %v118, %v131
    %vm145 = vcmp.eq.f32.partialorder %v119, %v140
    %vm146 = vcmp.eq.f32.partialorder %v120, %v140
    %vm147 = vcmp.eq.f32.partialorder %v121, %v140
    %vm148 = vcmp.eq.f32.partialorder %v122, %v140
    %v149 = vsel %vm141, 1.0, 0.0
    %v150 = vsel %vm142, 1.0, 0.0
    %v151 = vsel %vm143, 1.0, 0.0
    %v152 = vsel %vm144, 1.0, 0.0
    %v153 = vsel %vm145, 1.0, 0.0
    %v154 = vsel %vm146, 1.0, 0.0
    %v155 = vsel %vm147, 1.0, 0.0
    %v156 = vsel %vm148, 1.0, 0.0
    %v157 = vadd.f32 %v149, 0.0
    %v158 = vadd.f32 %v150, 0.0
    %v159 = vadd.f32 %v151, 0.0
    %v160 = vadd.f32 %v152, 0.0
    %v161 = vadd.f32 %v153, 0.0
    %v162 = vadd.f32 %v154, 0.0
    %v163 = vadd.f32 %v155, 0.0
    %v164 = vadd.f32 %v156, 0.0
    %s165 = scalar_lea.vmem [#allocation5], 4
    %v166 = vld [vmem:[%s165] sm:$0xf]
    %v167 = vld [vmem:[%s165 + $0x20] sm:$0xf]
    %v168 = vld [vmem:[%s165 + $0x40] sm:$0xf]
    %v169 = vld [vmem:[%s165 + $0x60] sm:$0xf]
    %v170 = vld [vmem:[%s165 + $0x80] sm:$0xf]
    %v171 = vld [vmem:[%s165 + $0xa0] sm:$0xf]
    %v172 = vld [vmem:[%s165 + $0xc0] sm:$0xf]
    %v173 = vld [vmem:[%s165 + $0xe0] sm:$0xf]
    %v174 = vunpack.c.l.bf16 %v166
    %v175 = vunpack.c.l.bf16 %v167
    %v176 = vunpack.c.l.bf16 %v168
    %v177 = vunpack.c.l.bf16 %v169
    %v178 = vunpack.c.l.bf16 %v170
    %v179 = vunpack.c.l.bf16 %v171
    %v180 = vunpack.c.l.bf16 %v172
    %v181 = vunpack.c.l.bf16 %v173
    %v182 = vmul.f32 %v174, 0.01
    %v183 = vmul.f32 %v175, 0.01
    %v184 = vmul.f32 %v176, 0.01
    %v185 = vmul.f32 %v177, 0.01
    %v186 = vmul.f32 %v178, 0.01
    %v187 = vmul.f32 %v179, 0.01
    %v188 = vmul.f32 %v180, 0.01
    %v189 = vmul.f32 %v181, 0.01
    %v190 = vadd.f32 %v59, %v182
    %v191 = vadd.f32 %v63, %v183
    %v192 = vadd.f32 %v67, %v184
    %v193 = vadd.f32 %v71, %v185
    %v194 = vadd.f32 %v78, %v186
    %v195 = vadd.f32 %v82, %v187
    %v196 = vadd.f32 %v86, %v188
    %v197 = vadd.f32 %v90, %v189
    %v198 = vmax.f32 %v190, %v192
    %v199 = vmax.f32 %v191, %v193
    %v200 = vmax.f32 %v198, %v199
    %v201 = vrot.slane %v200, 4
    %v202 = vmax.f32 %v200, %v201
    %v203 = vrot.slane %v202, 2
    %v204 = vmax.f32 %v202, %v203
    %v205 = vrot.slane %v204, 1
    %v206 = vmax.f32 %v204, %v205
    %v207 = vmax.f32 %v194, %v196
    %v208 = vmax.f32 %v195, %v197
    %v209 = vmax.f32 %v207, %v208
    %v210 = vrot.slane %v209, 4
    %v211 = vmax.f32 %v209, %v210
    %v212 = vrot.slane %v211, 2
    %v213 = vmax.f32 %v211, %v212
    %v214 = vrot.slane %v213, 1
    %v215 = vmax.f32 %v213, %v214
    %vm216 = vcmp.eq.f32.partialorder %v190, %v206
    %vm217 = vcmp.eq.f32.partialorder %v191, %v206
    %vm218 = vcmp.eq.f32.partialorder %v192, %v206
    %vm219 = vcmp.eq.f32.partialorder %v193, %v206
    %vm220 = vcmp.eq.f32.partialorder %v194, %v215
    %vm221 = vcmp.eq.f32.partialorder %v195, %v215
    %vm222 = vcmp.eq.f32.partialorder %v196, %v215
    %vm223 = vcmp.eq.f32.partialorder %v197, %v215
    %v224 = vsel %vm216, 1.0, 0.0
    %v225 = vsel %vm217, 1.0, 0.0
    %v226 = vsel %vm218, 1.0, 0.0
    %v227 = vsel %vm219, 1.0, 0.0
    %v228 = vsel %vm220, 1.0, 0.0
    %v229 = vsel %vm221, 1.0, 0.0
    %v230 = vsel %vm222, 1.0, 0.0
    %v231 = vsel %vm223, 1.0, 0.0
    %v232 = vadd.f32 %v157, %v224
    %v233 = vadd.f32 %v158, %v225
    %v234 = vadd.f32 %v159, %v226
    %v235 = vadd.f32 %v160, %v227
    %v236 = vadd.f32 %v161, %v228
    %v237 = vadd.f32 %v162, %v229
    %v238 = vadd.f32 %v163, %v230
    %v239 = vadd.f32 %v164, %v231
    %s240 = scalar_lea.vmem [#allocation5], 8
    %v241 = vld [vmem:[%s240] sm:$0xf]
    %v242 = vld [vmem:[%s240 + $0x20] sm:$0xf]
    %v243 = vld [vmem:[%s240 + $0x40] sm:$0xf]
    %v244 = vld [vmem:[%s240 + $0x60] sm:$0xf]
    %v245 = vld [vmem:[%s240 + $0x80] sm:$0xf]
    %v246 = vld [vmem:[%s240 + $0xa0] sm:$0xf]
    %v247 = vld [vmem:[%s240 + $0xc0] sm:$0xf]
    %v248 = vld [vmem:[%s240 + $0xe0] sm:$0xf]
    %v249 = vunpack.c.l.bf16 %v241
    %v250 = vunpack.c.l.bf16 %v242
    %v251 = vunpack.c.l.bf16 %v243
    %v252 = vunpack.c.l.bf16 %v244
    %v253 = vunpack.c.l.bf16 %v245
    %v254 = vunpack.c.l.bf16 %v246
    %v255 = vunpack.c.l.bf16 %v247
    %v256 = vunpack.c.l.bf16 %v248
    %v257 = vmul.f32 %v249, 0.01
    %v258 = vmul.f32 %v250, 0.01
    %v259 = vmul.f32 %v251, 0.01
    %v260 = vmul.f32 %v252, 0.01
    %v261 = vmul.f32 %v253, 0.01
    %v262 = vmul.f32 %v254, 0.01
    %v263 = vmul.f32 %v255, 0.01
    %v264 = vmul.f32 %v256, 0.01
    %v265 = vadd.f32 %v59, %v257
    %v266 = vadd.f32 %v63, %v258
    %v267 = vadd.f32 %v67, %v259
    %v268 = vadd.f32 %v71, %v260
    %v269 = vadd.f32 %v78, %v261
    %v270 = vadd.f32 %v82, %v262
    %v271 = vadd.f32 %v86, %v263
    %v272 = vadd.f32 %v90, %v264
    %v273 = vmax.f32 %v265, %v267
    %v274 = vmax.f32 %v266, %v268
    %v275 = vmax.f32 %v273, %v274
    %v276 = vrot.slane %v275, 4
    %v277 = vmax.f32 %v275, %v276
    %v278 = vrot.slane %v277, 2
    %v279 = vmax.f32 %v277, %v278
    %v280 = vrot.slane %v279, 1
    %v281 = vmax.f32 %v279, %v280
    %v282 = vmax.f32 %v269, %v271
    %v283 = vmax.f32 %v270, %v272
    %v284 = vmax.f32 %v282, %v283
    %v285 = vrot.slane %v284, 4
    %v286 = vmax.f32 %v284, %v285
    %v287 = vrot.slane %v286, 2
    %v288 = vmax.f32 %v286, %v287
    %v289 = vrot.slane %v288, 1
    %v290 = vmax.f32 %v288, %v289
    %vm291 = vcmp.eq.f32.partialorder %v265, %v281
    %vm292 = vcmp.eq.f32.partialorder %v266, %v281
    %vm293 = vcmp.eq.f32.partialorder %v267, %v281
    %vm294 = vcmp.eq.f32.partialorder %v268, %v281
    %vm295 = vcmp.eq.f32.partialorder %v269, %v290
    %vm296 = vcmp.eq.f32.partialorder %v270, %v290
    %vm297 = vcmp.eq.f32.partialorder %v271, %v290
    %vm298 = vcmp.eq.f32.partialorder %v272, %v290
    %v299 = vsel %vm291, 1.0, 0.0
    %v300 = vsel %vm292, 1.0, 0.0
    %v301 = vsel %vm293, 1.0, 0.0
    %v302 = vsel %vm294, 1.0, 0.0
    %v303 = vsel %vm295, 1.0, 0.0
    %v304 = vsel %vm296, 1.0, 0.0
    %v305 = vsel %vm297, 1.0, 0.0
    %v306 = vsel %vm298, 1.0, 0.0
    %v307 = vadd.f32 %v232, %v299
    %v308 = vadd.f32 %v233, %v300
    %v309 = vadd.f32 %v234, %v301
    %v310 = vadd.f32 %v235, %v302
    %v311 = vadd.f32 %v236, %v303
    %v312 = vadd.f32 %v237, %v304
    %v313 = vadd.f32 %v238, %v305
    %v314 = vadd.f32 %v239, %v306
    %s315 = scalar_lea.vmem [#allocation5], 12
    %v316 = vld [vmem:[%s315] sm:$0xf]
    %v317 = vld [vmem:[%s315 + $0x20] sm:$0xf]
    %v318 = vld [vmem:[%s315 + $0x40] sm:$0xf]
    %v319 = vld [vmem:[%s315 + $0x60] sm:$0xf]
    %v320 = vld [vmem:[%s315 + $0x80] sm:$0xf]
    %v321 = vld [vmem:[%s315 + $0xa0] sm:$0xf]
    %v322 = vld [vmem:[%s315 + $0xc0] sm:$0xf]
    %v323 = vld [vmem:[%s315 + $0xe0] sm:$0xf]
    %v324 = vunpack.c.l.bf16 %v316
    %v325 = vunpack.c.l.bf16 %v317
    %v326 = vunpack.c.l.bf16 %v318
    %v327 = vunpack.c.l.bf16 %v319
    %v328 = vunpack.c.l.bf16 %v320
    %v329 = vunpack.c.l.bf16 %v321
    %v330 = vunpack.c.l.bf16 %v322
    %v331 = vunpack.c.l.bf16 %v323
    %v332 = vmul.f32 %v324, 0.01
    %v333 = vmul.f32 %v325, 0.01
    %v334 = vmul.f32 %v326, 0.01
    %v335 = vmul.f32 %v327, 0.01
    %v336 = vmul.f32 %v328, 0.01
    %v337 = vmul.f32 %v329, 0.01
    %v338 = vmul.f32 %v330, 0.01
    %v339 = vmul.f32 %v331, 0.01
    %v340 = vadd.f32 %v59, %v332
    %v341 = vadd.f32 %v63, %v333
    %v342 = vadd.f32 %v67, %v334
    %v343 = vadd.f32 %v71, %v335
    %v344 = vadd.f32 %v78, %v336
    %v345 = vadd.f32 %v82, %v337
    %v346 = vadd.f32 %v86, %v338
    %v347 = vadd.f32 %v90, %v339
    %v348 = vmax.f32 %v340, %v342
    %v349 = vmax.f32 %v341, %v343
    %v350 = vmax.f32 %v348, %v349
    %v351 = vrot.slane %v350, 4
    %v352 = vmax.f32 %v350, %v351
    %v353 = vrot.slane %v352, 2
    %v354 = vmax.f32 %v352, %v353
    %v355 = vrot.slane %v354, 1
    %v356 = vmax.f32 %v354, %v355
    %v357 = vmax.f32 %v344, %v346
    %v358 = vmax.f32 %v345, %v347
    %v359 = vmax.f32 %v357, %v358
    %v360 = vrot.slane %v359, 4
    %v361 = vmax.f32 %v359, %v360
    %v362 = vrot.slane %v361, 2
    %v363 = vmax.f32 %v361, %v362
    %v364 = vrot.slane %v363, 1
    %v365 = vmax.f32 %v363, %v364
    %vm366 = vcmp.eq.f32.partialorder %v340, %v356
    %vm367 = vcmp.eq.f32.partialorder %v341, %v356
    %vm368 = vcmp.eq.f32.partialorder %v342, %v356
    %vm369 = vcmp.eq.f32.partialorder %v343, %v356
    %vm370 = vcmp.eq.f32.partialorder %v344, %v365
    %vm371 = vcmp.eq.f32.partialorder %v345, %v365
    %vm372 = vcmp.eq.f32.partialorder %v346, %v365
    %vm373 = vcmp.eq.f32.partialorder %v347, %v365
    %v374 = vsel %vm366, 1.0, 0.0
    %v375 = vsel %vm367, 1.0, 0.0
    %v376 = vsel %vm368, 1.0, 0.0
    %v377 = vsel %vm369, 1.0, 0.0
    %v378 = vsel %vm370, 1.0, 0.0
    %v379 = vsel %vm371, 1.0, 0.0
    %v380 = vsel %vm372, 1.0, 0.0
    %v381 = vsel %vm373, 1.0, 0.0
    %v382 = vadd.f32 %v307, %v374
    %v383 = vadd.f32 %v308, %v375
    %v384 = vadd.f32 %v309, %v376
    %v385 = vadd.f32 %v310, %v377
    %v386 = vadd.f32 %v311, %v378
    %v387 = vadd.f32 %v312, %v379
    %v388 = vadd.f32 %v313, %v380
    %v389 = vadd.f32 %v314, %v381
    %s390 = scalar_lea.vmem [#allocation5], 16
    %v391 = vld [vmem:[%s390] sm:$0xf]
    %v392 = vld [vmem:[%s390 + $0x20] sm:$0xf]
    %v393 = vld [vmem:[%s390 + $0x40] sm:$0xf]
    %v394 = vld [vmem:[%s390 + $0x60] sm:$0xf]
    %v395 = vld [vmem:[%s390 + $0x80] sm:$0xf]
    %v396 = vld [vmem:[%s390 + $0xa0] sm:$0xf]
    %v397 = vld [vmem:[%s390 + $0xc0] sm:$0xf]
    %v398 = vld [vmem:[%s390 + $0xe0] sm:$0xf]
    %v399 = vunpack.c.l.bf16 %v391
    %v400 = vunpack.c.l.bf16 %v392
    %v401 = vunpack.c.l.bf16 %v393
    %v402 = vunpack.c.l.bf16 %v394
    %v403 = vunpack.c.l.bf16 %v395
    %v404 = vunpack.c.l.bf16 %v396
    %v405 = vunpack.c.l.bf16 %v397
    %v406 = vunpack.c.l.bf16 %v398
    %v407 = vmul.f32 %v399, 0.01
    %v408 = vmul.f32 %v400, 0.01
    %v409 = vmul.f32 %v401, 0.01
    %v410 = vmul.f32 %v402, 0.01
    %v411 = vmul.f32 %v403, 0.01
    %v412 = vmul.f32 %v404, 0.01
    %v413 = vmul.f32 %v405, 0.01
    %v414 = vmul.f32 %v406, 0.01
    %v415 = vadd.f32 %v59, %v407
    %v416 = vadd.f32 %v63, %v408
    %v417 = vadd.f32 %v67, %v409
    %v418 = vadd.f32 %v71, %v410
    %v419 = vadd.f32 %v78, %v411
    %v420 = vadd.f32 %v82, %v412
    %v421 = vadd.f32 %v86, %v413
    %v422 = vadd.f32 %v90, %v414
    %v423 = vmax.f32 %v415, %v417
    %v424 = vmax.f32 %v416, %v418
    %v425 = vmax.f32 %v423, %v424
    %v426 = vrot.slane %v425, 4
    %v427 = vmax.f32 %v425, %v426
    %v428 = vrot.slane %v427, 2
    %v429 = vmax.f32 %v427, %v428
    %v430 = vrot.slane %v429, 1
    %v431 = vmax.f32 %v429, %v430
    %v432 = vmax.f32 %v419, %v421
    %v433 = vmax.f32 %v420, %v422
    %v434 = vmax.f32 %v432, %v433
    %v435 = vrot.slane %v434, 4
    %v436 = vmax.f32 %v434, %v435
    %v437 = vrot.slane %v436, 2
    %v438 = vmax.f32 %v436, %v437
    %v439 = vrot.slane %v438, 1
    %v440 = vmax.f32 %v438, %v439
    %vm441 = vcmp.eq.f32.partialorder %v415, %v431
    %vm442 = vcmp.eq.f32.partialorder %v416, %v431
    %vm443 = vcmp.eq.f32.partialorder %v417, %v431
    %vm444 = vcmp.eq.f32.partialorder %v418, %v431
    %vm445 = vcmp.eq.f32.partialorder %v419, %v440
    %vm446 = vcmp.eq.f32.partialorder %v420, %v440
    %vm447 = vcmp.eq.f32.partialorder %v421, %v440
    %vm448 = vcmp.eq.f32.partialorder %v422, %v440
    %v449 = vsel %vm441, 1.0, 0.0
    %v450 = vsel %vm442, 1.0, 0.0
    %v451 = vsel %vm443, 1.0, 0.0
    %v452 = vsel %vm444, 1.0, 0.0
    %v453 = vsel %vm445, 1.0, 0.0
    %v454 = vsel %vm446, 1.0, 0.0
    %v455 = vsel %vm447, 1.0, 0.0
    %v456 = vsel %vm448, 1.0, 0.0
    %v457 = vadd.f32 %v382, %v449
    %v458 = vadd.f32 %v383, %v450
    %v459 = vadd.f32 %v384, %v451
    %v460 = vadd.f32 %v385, %v452
    %v461 = vadd.f32 %v386, %v453
    %v462 = vadd.f32 %v387, %v454
    %v463 = vadd.f32 %v388, %v455
    %v464 = vadd.f32 %v389, %v456
    %s465 = scalar_lea.vmem [#allocation5], 20
    %v466 = vld [vmem:[%s465] sm:$0xf]
    %v467 = vld [vmem:[%s465 + $0x20] sm:$0xf]
    %v468 = vld [vmem:[%s465 + $0x40] sm:$0xf]
    %v469 = vld [vmem:[%s465 + $0x60] sm:$0xf]
    %v470 = vld [vmem:[%s465 + $0x80] sm:$0xf]
    %v471 = vld [vmem:[%s465 + $0xa0] sm:$0xf]
    %v472 = vld [vmem:[%s465 + $0xc0] sm:$0xf]
    %v473 = vld [vmem:[%s465 + $0xe0] sm:$0xf]
    %v474 = vunpack.c.l.bf16 %v466
    %v475 = vunpack.c.l.bf16 %v467
    %v476 = vunpack.c.l.bf16 %v468
    %v477 = vunpack.c.l.bf16 %v469
    %v478 = vunpack.c.l.bf16 %v470
    %v479 = vunpack.c.l.bf16 %v471
    %v480 = vunpack.c.l.bf16 %v472
    %v481 = vunpack.c.l.bf16 %v473
    %v482 = vmul.f32 %v474, 0.01
    %v483 = vmul.f32 %v475, 0.01
    %v484 = vmul.f32 %v476, 0.01
    %v485 = vmul.f32 %v477, 0.01
    %v486 = vmul.f32 %v478, 0.01
    %v487 = vmul.f32 %v479, 0.01
    %v488 = vmul.f32 %v480, 0.01
    %v489 = vmul.f32 %v481, 0.01
    %v490 = vadd.f32 %v59, %v482
    %v491 = vadd.f32 %v63, %v483
    %v492 = vadd.f32 %v67, %v484
    %v493 = vadd.f32 %v71, %v485
    %v494 = vadd.f32 %v78, %v486
    %v495 = vadd.f32 %v82, %v487
    %v496 = vadd.f32 %v86, %v488
    %v497 = vadd.f32 %v90, %v489
    %v498 = vmax.f32 %v490, %v492
    %v499 = vmax.f32 %v491, %v493
    %v500 = vmax.f32 %v498, %v499
    %v501 = vrot.slane %v500, 4
    %v502 = vmax.f32 %v500, %v501
    %v503 = vrot.slane %v502, 2
    %v504 = vmax.f32 %v502, %v503
    %v505 = vrot.slane %v504, 1
    %v506 = vmax.f32 %v504, %v505
    %v507 = vmax.f32 %v494, %v496
    %v508 = vmax.f32 %v495, %v497
    %v509 = vmax.f32 %v507, %v508
    %v510 = vrot.slane %v509, 4
    %v511 = vmax.f32 %v509, %v510
    %v512 = vrot.slane %v511, 2
    %v513 = vmax.f32 %v511, %v512
    %v514 = vrot.slane %v513, 1
    %v515 = vmax.f32 %v513, %v514
    %vm516 = vcmp.eq.f32.partialorder %v490, %v506
    %vm517 = vcmp.eq.f32.partialorder %v491, %v506
    %vm518 = vcmp.eq.f32.partialorder %v492, %v506
    %vm519 = vcmp.eq.f32.partialorder %v493, %v506
    %vm520 = vcmp.eq.f32.partialorder %v494, %v515
    %vm521 = vcmp.eq.f32.partialorder %v495, %v515
    %vm522 = vcmp.eq.f32.partialorder %v496, %v515
    %vm523 = vcmp.eq.f32.partialorder %v497, %v515
    %v524 = vsel %vm516, 1.0, 0.0
    %v525 = vsel %vm517, 1.0, 0.0
    %v526 = vsel %vm518, 1.0, 0.0
    %v527 = vsel %vm519, 1.0, 0.0
    %v528 = vsel %vm520, 1.0, 0.0
    %v529 = vsel %vm521, 1.0, 0.0
    %v530 = vsel %vm522, 1.0, 0.0
    %v531 = vsel %vm523, 1.0, 0.0
    %v532 = vadd.f32 %v457, %v524
    %v533 = vadd.f32 %v458, %v525
    %v534 = vadd.f32 %v459, %v526
    %v535 = vadd.f32 %v460, %v527
    %v536 = vadd.f32 %v461, %v528
    %v537 = vadd.f32 %v462, %v529
    %v538 = vadd.f32 %v463, %v530
    %v539 = vadd.f32 %v464, %v531
    %s540 = scalar_lea.vmem [#allocation5], 24
    %v541 = vld [vmem:[%s540] sm:$0xf]
    %v542 = vld [vmem:[%s540 + $0x20] sm:$0xf]
    %v543 = vld [vmem:[%s540 + $0x40] sm:$0xf]
    %v544 = vld [vmem:[%s540 + $0x60] sm:$0xf]
    %v545 = vld [vmem:[%s540 + $0x80] sm:$0xf]
    %v546 = vld [vmem:[%s540 + $0xa0] sm:$0xf]
    %v547 = vld [vmem:[%s540 + $0xc0] sm:$0xf]
    %v548 = vld [vmem:[%s540 + $0xe0] sm:$0xf]
    %v549 = vunpack.c.l.bf16 %v541
    %v550 = vunpack.c.l.bf16 %v542
    %v551 = vunpack.c.l.bf16 %v543
    %v552 = vunpack.c.l.bf16 %v544
    %v553 = vunpack.c.l.bf16 %v545
    %v554 = vunpack.c.l.bf16 %v546
    %v555 = vunpack.c.l.bf16 %v547
    %v556 = vunpack.c.l.bf16 %v548
    %v557 = vmul.f32 %v549, 0.01
    %v558 = vmul.f32 %v550, 0.01
    %v559 = vmul.f32 %v551, 0.01
    %v560 = vmul.f32 %v552, 0.01
    %v561 = vmul.f32 %v553, 0.01
    %v562 = vmul.f32 %v554, 0.01
    %v563 = vmul.f32 %v555, 0.01
    %v564 = vmul.f32 %v556, 0.01
    %v565 = vadd.f32 %v59, %v557
    %v566 = vadd.f32 %v63, %v558
    %v567 = vadd.f32 %v67, %v559
    %v568 = vadd.f32 %v71, %v560
    %v569 = vadd.f32 %v78, %v561
    %v570 = vadd.f32 %v82, %v562
    %v571 = vadd.f32 %v86, %v563
    %v572 = vadd.f32 %v90, %v564
    %v573 = vmax.f32 %v565, %v567
    %v574 = vmax.f32 %v566, %v568
    %v575 = vmax.f32 %v573, %v574
    %v576 = vrot.slane %v575, 4
    %v577 = vmax.f32 %v575, %v576
    %v578 = vrot.slane %v577, 2
    %v579 = vmax.f32 %v577, %v578
    %v580 = vrot.slane %v579, 1
    %v581 = vmax.f32 %v579, %v580
    %v582 = vmax.f32 %v569, %v571
    %v583 = vmax.f32 %v570, %v572
    %v584 = vmax.f32 %v582, %v583
    %v585 = vrot.slane %v584, 4
    %v586 = vmax.f32 %v584, %v585
    %v587 = vrot.slane %v586, 2
    %v588 = vmax.f32 %v586, %v587
    %v589 = vrot.slane %v588, 1
    %v590 = vmax.f32 %v588, %v589
    %vm591 = vcmp.eq.f32.partialorder %v565, %v581
    %vm592 = vcmp.eq.f32.partialorder %v566, %v581
    %vm593 = vcmp.eq.f32.partialorder %v567, %v581
    %vm594 = vcmp.eq.f32.partialorder %v568, %v581
    %vm595 = vcmp.eq.f32.partialorder %v569, %v590
    %vm596 = vcmp.eq.f32.partialorder %v570, %v590
    %vm597 = vcmp.eq.f32.partialorder %v571, %v590
    %vm598 = vcmp.eq.f32.partialorder %v572, %v590
    %v599 = vsel %vm591, 1.0, 0.0
    %v600 = vsel %vm592, 1.0, 0.0
    %v601 = vsel %vm593, 1.0, 0.0
    %v602 = vsel %vm594, 1.0, 0.0
    %v603 = vsel %vm595, 1.0, 0.0
    %v604 = vsel %vm596, 1.0, 0.0
    %v605 = vsel %vm597, 1.0, 0.0
    %v606 = vsel %vm598, 1.0, 0.0
    %v607 = vadd.f32 %v532, %v599
    %v608 = vadd.f32 %v533, %v600
    %v609 = vadd.f32 %v534, %v601
    %v610 = vadd.f32 %v535, %v602
    %v611 = vadd.f32 %v536, %v603
    %v612 = vadd.f32 %v537, %v604
    %v613 = vadd.f32 %v538, %v605
    %v614 = vadd.f32 %v539, %v606
    %s615 = scalar_lea.vmem [#allocation5], 28
    %v616 = vld [vmem:[%s615] sm:$0xf]
    %v617 = vld [vmem:[%s615 + $0x20] sm:$0xf]
    %v618 = vld [vmem:[%s615 + $0x40] sm:$0xf]
    %v619 = vld [vmem:[%s615 + $0x60] sm:$0xf]
    %v620 = vld [vmem:[%s615 + $0x80] sm:$0xf]
    %v621 = vld [vmem:[%s615 + $0xa0] sm:$0xf]
    %v622 = vld [vmem:[%s615 + $0xc0] sm:$0xf]
    %v623 = vld [vmem:[%s615 + $0xe0] sm:$0xf]
    %v624 = vunpack.c.l.bf16 %v616
    %v625 = vunpack.c.l.bf16 %v617
    %v626 = vunpack.c.l.bf16 %v618
    %v627 = vunpack.c.l.bf16 %v619
    %v628 = vunpack.c.l.bf16 %v620
    %v629 = vunpack.c.l.bf16 %v621
    %v630 = vunpack.c.l.bf16 %v622
    %v631 = vunpack.c.l.bf16 %v623
    %v632 = vmul.f32 %v624, 0.01
    %v633 = vmul.f32 %v625, 0.01
    %v634 = vmul.f32 %v626, 0.01
    %v635 = vmul.f32 %v627, 0.01
    %v636 = vmul.f32 %v628, 0.01
    %v637 = vmul.f32 %v629, 0.01
    %v638 = vmul.f32 %v630, 0.01
    %v639 = vmul.f32 %v631, 0.01
    %v640 = vadd.f32 %v59, %v632
    %v641 = vadd.f32 %v63, %v633
    %v642 = vadd.f32 %v67, %v634
    %v643 = vadd.f32 %v71, %v635
    %v644 = vadd.f32 %v78, %v636
    %v645 = vadd.f32 %v82, %v637
    %v646 = vadd.f32 %v86, %v638
    %v647 = vadd.f32 %v90, %v639
    %v648 = vmax.f32 %v640, %v642
    %v649 = vmax.f32 %v641, %v643
    %v650 = vmax.f32 %v648, %v649
    %v651 = vrot.slane %v650, 4
    %v652 = vmax.f32 %v650, %v651
    %v653 = vrot.slane %v652, 2
    %v654 = vmax.f32 %v652, %v653
    %v655 = vrot.slane %v654, 1
    %v656 = vmax.f32 %v654, %v655
    %v657 = vmax.f32 %v644, %v646
    %v658 = vmax.f32 %v645, %v647
    %v659 = vmax.f32 %v657, %v658
    %v660 = vrot.slane %v659, 4
    %v661 = vmax.f32 %v659, %v660
    %v662 = vrot.slane %v661, 2
    %v663 = vmax.f32 %v661, %v662
    %v664 = vrot.slane %v663, 1
    %v665 = vmax.f32 %v663, %v664
    %vm666 = vcmp.eq.f32.partialorder %v640, %v656
    %vm667 = vcmp.eq.f32.partialorder %v641, %v656
    %vm668 = vcmp.eq.f32.partialorder %v642, %v656
    %vm669 = vcmp.eq.f32.partialorder %v643, %v656
    %vm670 = vcmp.eq.f32.partialorder %v644, %v665
    %vm671 = vcmp.eq.f32.partialorder %v645, %v665
    %vm672 = vcmp.eq.f32.partialorder %v646, %v665
    %vm673 = vcmp.eq.f32.partialorder %v647, %v665
    %v674 = vsel %vm666, 1.0, 0.0
    %v675 = vsel %vm667, 1.0, 0.0
    %v676 = vsel %vm668, 1.0, 0.0
    %v677 = vsel %vm669, 1.0, 0.0
    %v678 = vsel %vm670, 1.0, 0.0
    %v679 = vsel %vm671, 1.0, 0.0
    %v680 = vsel %vm672, 1.0, 0.0
    %v681 = vsel %vm673, 1.0, 0.0
    %v682 = vadd.f32 %v607, %v674
    %v683 = vadd.f32 %v608, %v675
    %v684 = vadd.f32 %v609, %v676
    %v685 = vadd.f32 %v610, %v677
    %v686 = vadd.f32 %v611, %v678
    %v687 = vadd.f32 %v612, %v679
    %v688 = vadd.f32 %v613, %v680
    %v689 = vadd.f32 %v614, %v681
    %v690 = vld [vmem:[#allocation2] sm:$0xff]
    %v691 = vld [vmem:[#allocation2 + $0x8] sm:$0xff]
    %v692 = vld [vmem:[#allocation2 + $0x10] sm:$0xff]
    %v693 = vld [vmem:[#allocation2 + $0x18] sm:$0xff]
    %v694 = vld [vmem:[#allocation2 + $0x20] sm:$0xff]
    %v695 = vld [vmem:[#allocation2 + $0x28] sm:$0xff]
    %v696 = vld [vmem:[#allocation2 + $0x30] sm:$0xff]
    %v697 = vld [vmem:[#allocation2 + $0x38] sm:$0xff]
    %v698 = vadd.f32 %v690, %v682
    %v699 = vadd.f32 %v691, %v683
    %v700 = vadd.f32 %v692, %v684
    %v701 = vadd.f32 %v693, %v685
    %v702 = vadd.f32 %v694, %v686
    %v703 = vadd.f32 %v695, %v687
    %v704 = vadd.f32 %v696, %v688
    %v705 = vadd.f32 %v697, %v689
    %706 = vst [vmem:[#allocation2] sm:$0xff] %v698
    %707 = vst [vmem:[#allocation2 + $0x8] sm:$0xff] %v699
    %708 = vst [vmem:[#allocation2 + $0x10] sm:$0xff] %v700
    %709 = vst [vmem:[#allocation2 + $0x18] sm:$0xff] %v701
    %710 = vst [vmem:[#allocation2 + $0x20] sm:$0xff] %v702
    %711 = vst [vmem:[#allocation2 + $0x28] sm:$0xff] %v703
    %712 = vst [vmem:[#allocation2 + $0x30] sm:$0xff] %v704
    %713 = vst [vmem:[#allocation2 + $0x38] sm:$0xff] %v705
    // Predicated region
    $region26: #{tpu_custom_call.1} parent=1 // pred_check
      %p714 = pneg %p40
    $region27: #{tpu_custom_call.1} parent=1 // pred_check_branch
      %716 = sbr.rel (%p714) target = $region29
    $region28: #{tpu_custom_call.1} parent=1 // pred_region
      %v717 = vld [vmem:[#allocation2] sm:$0xff]
      %v718 = vld [vmem:[#allocation2 + $0x8] sm:$0xff]
      %v719 = vld [vmem:[#allocation2 + $0x10] sm:$0xff]
      %v720 = vld [vmem:[#allocation2 + $0x18] sm:$0xff]
      %v721 = vld [vmem:[#allocation2 + $0x20] sm:$0xff]
      %v722 = vld [vmem:[#allocation2 + $0x28] sm:$0xff]
      %v723 = vld [vmem:[#allocation2 + $0x30] sm:$0xff]
      %v724 = vld [vmem:[#allocation2 + $0x38] sm:$0xff]
      %725 = vadd.xlane.f32.xlu0 %v717
      %v726 = vpop.xlane.xlu0 %725
      %727 = vadd.xlane.f32.xlu0 %v718
      %v728 = vpop.xlane.xlu0 %727
      %729 = vadd.xlane.f32.xlu0 %v719
      %v730 = vpop.xlane.xlu0 %729
      %731 = vadd.xlane.f32.xlu0 %v720
      %v732 = vpop.xlane.xlu0 %731
      %733 = vadd.xlane.f32.xlu0 %v721
      %v734 = vpop.xlane.xlu0 %733
      %735 = vadd.xlane.f32.xlu0 %v722
      %v736 = vpop.xlane.xlu0 %735
      %737 = vadd.xlane.f32.xlu0 %v723
      %v738 = vpop.xlane.xlu0 %737
      %739 = vadd.xlane.f32.xlu0 %v724
      %v740 = vpop.xlane.xlu0 %739
      %v741 = vlaneseq
      %v742 = vand.u32 %v741, 127
      %vm743 = vcmp.eq.s32.totalorder %v742, 0
      %v744 = vsel %vm743, 24.0, 0.0
      %747 = vbcast.lane.b32.xlu0 %v744, 256
      %v748 = vpop.permute.xlu0 %747
      %s750 = sor.u32 256, 8
      %751 = vbcast.lane.b32.xlu0 %v744, %s750
      %v752 = vpop.permute.xlu0 %751
      %s754 = sor.u32 256, 16
      %755 = vbcast.lane.b32.xlu0 %v744, %s754
      %v756 = vpop.permute.xlu0 %755
      %s758 = sor.u32 256, 24
      %759 = vbcast.lane.b32.xlu0 %v744, %s758
      %v760 = vpop.permute.xlu0 %759
      %v765 = vsub.f32 %v726, %v748
      %v766 = vsub.f32 %v728, %v752
      %v767 = vsub.f32 %v730, %v756
      %v768 = vsub.f32 %v732, %v760
      %v769 = vsub.f32 %v734, %v748
      %v770 = vsub.f32 %v736, %v752
      %v771 = vsub.f32 %v738, %v756
      %v772 = vsub.f32 %v740, %v760
      %v773 = vmul.f32 %v765, 0.001
      %v774 = vmul.f32 %v766, 0.001
      %v775 = vmul.f32 %v767, 0.001
      %v776 = vmul.f32 %v768, 0.001
      %v777 = vmul.f32 %v769, 0.001
      %v778 = vmul.f32 %v770, 0.001
      %v779 = vmul.f32 %v771, 0.001
      %v780 = vmul.f32 %v772, 0.001
      %v781 = vld [vmem:[%s1] sm:$0x3]
      %v783 = vlaneseq
      %v784 = vshrl.u32 %v783, 7
      %v785 = vsub.s32 0, %v784
      %v786 = vrot.slane %v781, %v785
      %788 = vbcast.lane.b32.xlu0 %v786, 256
      %v789 = vpop.permute.xlu0 %788
      %s791 = sor.u32 256, 8
      %792 = vbcast.lane.b32.xlu0 %v786, %s791
      %v793 = vpop.permute.xlu0 %792
      %s795 = sor.u32 256, 16
      %796 = vbcast.lane.b32.xlu0 %v786, %s795
      %v797 = vpop.permute.xlu0 %796
      %s799 = sor.u32 256, 24
      %800 = vbcast.lane.b32.xlu0 %v786, %s799
      %v801 = vpop.permute.xlu0 %800
      %v802 = vlaneseq
      %v803 = vshrl.u32 %v802, 7
      %v804 = vsub.s32 1, %v803
      %v805 = vrot.slane %v781, %v804
      %807 = vbcast.lane.b32.xlu0 %v805, 256
      %v808 = vpop.permute.xlu0 %807
      %s810 = sor.u32 256, 8
      %811 = vbcast.lane.b32.xlu0 %v805, %s810
      %v812 = vpop.permute.xlu0 %811
      %s814 = sor.u32 256, 16
      %815 = vbcast.lane.b32.xlu0 %v805, %s814
      %v816 = vpop.permute.xlu0 %815
      %s818 = sor.u32 256, 24
      %819 = vbcast.lane.b32.xlu0 %v805, %s818
      %v820 = vpop.permute.xlu0 %819
      %v829 = vsub.f32 %v773, %v789
      %v830 = vsub.f32 %v774, %v793
      %v831 = vsub.f32 %v775, %v797
      %v832 = vsub.f32 %v776, %v801
      %v833 = vsub.f32 %v777, %v808
      %v834 = vsub.f32 %v778, %v812
      %v835 = vsub.f32 %v779, %v816
      %v836 = vsub.f32 %v780, %v820
      %v837 = vmul.f32 %v829, %v829
      %v838 = vmul.f32 %v830, %v830
      %v839 = vmul.f32 %v831, %v831
      %v840 = vmul.f32 %v832, %v832
      %v841 = vmul.f32 %v833, %v833
      %v842 = vmul.f32 %v834, %v834
      %v843 = vmul.f32 %v835, %v835
      %v844 = vmul.f32 %v836, %v836
      %853 = vset.pattern.permute.xlu0 0
      %854 = vperm.xlu0 %853, %v837
      %v855 = vpop.permute.xlu0 %854
      %856 = vset.pattern.permute.xlu0 0
      %857 = vperm.xlu0 %856, %v838
      %v858 = vpop.permute.xlu0 %857
      %859 = vset.pattern.permute.xlu0 0
      %860 = vperm.xlu0 %859, %v839
      %v861 = vpop.permute.xlu0 %860
      %862 = vset.pattern.permute.xlu0 0
      %863 = vperm.xlu0 %862, %v840
      %v864 = vpop.permute.xlu0 %863
      %865 = vset.pattern.permute.xlu0 0
      %866 = vperm.xlu0 %865, %v841
      %v867 = vpop.permute.xlu0 %866
      %868 = vset.pattern.permute.xlu0 0
      %869 = vperm.xlu0 %868, %v842
      %v870 = vpop.permute.xlu0 %869
      %871 = vset.pattern.permute.xlu0 0
      %872 = vperm.xlu0 %871, %v843
      %v873 = vpop.permute.xlu0 %872
      %874 = vset.pattern.permute.xlu0 0
      %875 = vperm.xlu0 %874, %v844
      %v876 = vpop.permute.xlu0 %875
      %v877 = vlaneseq
      %v878 = vshrl.u32 %v877, 7
      %v879 = vsub.s32 %v742, %v878
      %v880 = vrot.slane %v855, %v879
      %v881 = vadd.s32 %v742, 4294967288
      %v882 = vlaneseq
      %v883 = vshrl.u32 %v882, 7
      %v884 = vsub.s32 %v881, %v883
      %v885 = vrot.slane %v858, %v884
      %vm886 = vcmask 130112
      %v887 = vsel %vm886, %v885, %v880
      %v888 = vadd.s32 %v742, 4294967280
      %v889 = vlaneseq
      %v890 = vshrl.u32 %v889, 7
      %v891 = vsub.s32 %v888, %v890
      %v892 = vrot.slane %v861, %v891
      %vm893 = vcmask 195712
      %v894 = vsel %vm893, %v892, %v887
      %v895 = vadd.s32 %v742, 4294967272
      %v896 = vlaneseq
      %v897 = vshrl.u32 %v896, 7
      %v898 = vsub.s32 %v895, %v897
      %v899 = vrot.slane %v864, %v898
      %vm900 = vcmask 261312
      %v901 = vsel %vm900, %v899, %v894
      %v902 = vlaneseq
      %v903 = vshrl.u32 %v902, 7
      %v904 = vsub.s32 %v742, %v903
      %v905 = vrot.slane %v867, %v904
      %v906 = vlaneseq
      %v907 = vshrl.u32 %v906, 7
      %v908 = vsub.s32 %v881, %v907
      %v909 = vrot.slane %v870, %v908
      %v910 = vsel %vm886, %v909, %v905
      %v911 = vlaneseq
      %v912 = vshrl.u32 %v911, 7
      %v913 = vsub.s32 %v888, %v912
      %v914 = vrot.slane %v873, %v913
      %v915 = vsel %vm893, %v914, %v910
      %v916 = vlaneseq
      %v917 = vshrl.u32 %v916, 7
      %v918 = vsub.s32 %v895, %v917
      %v919 = vrot.slane %v876, %v918
      %v920 = vsel %vm900, %v919, %v915
      %vm921 = vcmask 1041409
      %v922 = vsel %vm921, %v920, %v901
      %vm924 = vcmask 254976
      %v925 = vsel %vm924, %v922, 0.0
      %926 = vadd.xlane.f32.xlu0 %v925
      %v927 = vpop.xlane.xlu0 %926
      %vm928 = vcmask 1024
      %929 = vst.msk [vmem:[%s3] sm:$0x3] %vm928, %v927
    $region29: #{tpu_custom_call.1} parent=1 // pred_fallthru
      _
    // Predicated region
    $region30: #{tpu_custom_call.1} parent=1 // pred_check
      _
    $region31: #{tpu_custom_call.1} parent=1 // pred_check_branch
      %931 = sbr.rel (0) target = $region33
    $region32: #{tpu_custom_call.1} parent=1 // pred_region
      _
    $region33: #{tpu_custom_call.1} parent=1 // pred_fallthru
      _
    // Predicated region
    $region34: #{tpu_custom_call.1} parent=1 // pred_check
      _
    $region35: #{tpu_custom_call.1} parent=1 // pred_check_branch
      %933 = sbr.rel (0) target = $region37
    $region36: #{tpu_custom_call.1} parent=1 // pred_region
      _
    $region37: #{tpu_custom_call.1} parent=1 // pred_fallthru
      _
    %934 = vsyncpa [#allocation4], 1
    %935 = vsyncpa [#allocation6], 1

</llo_original>
